<compile_context>
chip_gen: v6e
topology: v6e:2x2x1
jax: 0.10.0
libtpu: 0.0.40
codegen_flags: <defaults>
</compile_context>

<pallas_src>
import functools

import jax
import jax.numpy as jnp
from jax import lax
from jax.experimental import pallas as pl
from jax.experimental.pallas import tpu as pltpu


def _round_up(a, m):
    return (a + m - 1) // m * m


# ---------------------------------------------------------------------------
# Fused GRU + fc kernel.  One grid step == one batch block of TB sequences.
# ---------------------------------------------------------------------------
def _gru_fc_kernel(nsteps_ref,                     # (nb,) int32, SMEM prefetch
                   x_ref,                          # (T, TB, I) time-major block
                   lens_ref,                       # (TB, 1) int32
                   wih_ref,                        # (I, 3H)   W_ih^T (gate order r|z|n)
                   whh_ref,                        # (H, 3H)   W_hh^T
                   bx_ref,                         # (1, 3H)   b_ih + [b_hr, b_hz, 0]
                   bhn_ref,                        # (1, H)    b_hn
                   wfc_ref,                        # (H, Opad) W_fc^T, lane-padded
                   bfc_ref,                        # (1, Opad)
                   out_ref,                        # (T, TB, Opad) f32
                   xp_scr,                         # (T*TB, 3H) f32 VMEM
                   h_scr):                         # (T*TB, H)  f32 VMEM
    T, TB, I = x_ref.shape
    H = whh_ref.shape[0]
    Opad = wfc_ref.shape[1]
    md = wih_ref.dtype                             # MXU operand dtype (bf16 or f32)

    # Hoisted input projection for the whole block: one (T*TB, I) x (I, 3H) matmul.
    x = x_ref[...].reshape(T * TB, I)
    xp_scr[...] = (jnp.dot(x, wih_ref[...], preferred_element_type=jnp.float32)
                   + bx_ref[...])

    whh = whh_ref[...]
    bhn_b = jnp.broadcast_to(bhn_ref[...], (TB, H))   # hoisted out of the loop

    def step(t, h):                                   # h: (TB, H) f32 carry (vregs)
        row = pl.multiple_of(t * TB, TB)
        gx = xp_scr[pl.ds(row, TB), :]                # (TB, 3H) contiguous tile
        gh = jnp.dot(h.astype(md), whh, preferred_element_type=jnp.float32)
        # r and z share one wide sigmoid (2 EUP pushes per step instead of 3).
        rz = jax.nn.sigmoid(gx[:, :2 * H] + gh[:, :2 * H])
        r = rz[:, :H]
        z = rz[:, H:]
        n = jnp.tanh(gx[:, 2 * H:] + r * (gh[:, 2 * H:] + bhn_b))
        h_new = (1.0 - z) * n + z * h
        h_scr[pl.ds(row, TB), :] = h_new
        return h_new

    # Serial recurrence bounded by this block's max sequence length.
    nsteps = nsteps_ref[pl.program_id(0)]
    lax.fori_loop(0, nsteps, step, jnp.zeros((TB, H), jnp.float32))

    # pad_packed_sequence: zero hidden outputs at t >= length (this also kills
    # stale scratch rows past nsteps), then one lane-dense fc matmul + store.
    h_all = h_scr[...].reshape(T, TB, H)
    t_ids = lax.broadcasted_iota(jnp.int32, (T, TB, 1), 0)
    lens_b = lens_ref[...].reshape(1, TB, 1)
    h_all = jnp.where(t_ids < lens_b, h_all, 0.0)
    y = (jnp.dot(h_all.reshape(T * TB, H).astype(md), wfc_ref[...],
                 preferred_element_type=jnp.float32) + bfc_ref[...])
    out_ref[...] = y.reshape(T, TB, Opad)


# ---------------------------------------------------------------------------
# Wrapper: single pallas_call, batch blocks on a "parallel" grid axis.
# ---------------------------------------------------------------------------
@functools.partial(jax.jit, static_argnames=("block_batch", "matmul_dtype"))
def dynamic_output_layer_forward(x, lengths, params, *, block_batch=128,
                                 matmul_dtype=jnp.bfloat16):
    wih_t, whh_t, bias_x, bias_hn, wfc_t, bias_fc = params
    B, T, I = x.shape
    H = whh_t.shape[0]
    G = 3 * H
    O = wfc_t.shape[1]
    Opad = max(128, _round_up(O, 128))              # lane-dense output slab

    # Sub-32-bit operands pack 16 rows per sublane pair: keep batch tile aligned.
    gran = 8 if jnp.dtype(matmul_dtype).itemsize >= 4 else 16
    TB = min(_round_up(block_batch, gran), _round_up(B, gran))
    B_pad = _round_up(B, TB)
    nb = B_pad // TB

    # enforce_sorted=False: sort by descending length so each block's serial loop
    # bound is tight; un-permute the output at the end.
    lengths = lengths.astype(jnp.int32)
    order = jnp.argsort(-lengths)
    inv = jnp.argsort(order)
    x_s = jnp.pad(x[order].astype(jnp.float32), ((0, B_pad - B), (0, 0), (0, 0)))
    len_s = jnp.pad(lengths[order], (0, B_pad - B))
    block_nsteps = len_s.reshape(nb, TB).max(axis=1)            # (nb,) int32

    x_tm = jnp.transpose(x_s, (1, 0, 2)).astype(matmul_dtype)   # (T, B_pad, I)
    lens_v = len_s.reshape(B_pad, 1)

    wih = wih_t.astype(matmul_dtype)
    whh = whh_t.astype(matmul_dtype)
    wfc = jnp.pad(wfc_t, ((0, 0), (0, Opad - O))).astype(matmul_dtype)
    bfc = jnp.pad(bias_fc, ((0, 0), (0, Opad - O)))

    grid_spec = pltpu.PrefetchScalarGridSpec(
        num_scalar_prefetch=1,                      # per-block max length -> SMEM
        grid=(nb,),
        in_specs=[
            pl.BlockSpec((T, TB, I), lambda i, ns: (0, i, 0)),   # x (time-major)
            pl.BlockSpec((TB, 1), lambda i, ns: (i, 0)),         # lengths
            pl.BlockSpec((I, G), lambda i, ns: (0, 0)),          # W_ih^T  (grid-invariant)
            pl.BlockSpec((H, G), lambda i, ns: (0, 0)),          # W_hh^T
            pl.BlockSpec((1, G), lambda i, ns: (0, 0)),          # folded bias
            pl.BlockSpec((1, H), lambda i, ns: (0, 0)),          # b_hn
            pl.BlockSpec((H, Opad), lambda i, ns: (0, 0)),       # W_fc^T (lane-padded)
            pl.BlockSpec((1, Opad), lambda i, ns: (0, 0)),       # b_fc
        ],
        out_specs=pl.BlockSpec((T, TB, Opad), lambda i, ns: (0, i, 0)),
        scratch_shapes=[pltpu.VMEM((T * TB, G), jnp.float32),    # x-projection
                        pltpu.VMEM((T * TB, H), jnp.float32)],   # all hidden states
    )

    out_tm = pl.pallas_call(
        _gru_fc_kernel,
        out_shape=jax.ShapeDtypeStruct((T, B_pad, Opad), jnp.float32),
        grid_spec=grid_spec,
        compiler_params=pltpu.CompilerParams(
            dimension_semantics=("parallel",)),     # megacore split on v7x
    )(block_nsteps, x_tm, lens_v, wih, whh, bias_x, bias_hn, wfc, bfc)

    out = jnp.transpose(out_tm, (1, 0, 2))          # (B_pad, T, Opad)
    return out[inv, :, :O]                          # un-sort, drop batch/lane padding


# ---------------------------------------------------------------------------
# Parameter init (PyTorch-style uniform ranges), packed for the kernel.
# ---------------------------------------------------------------------------
def init_params(key, input_size, hidden_size, output_size):
    H = hidden_size
    k_rnn = 1.0 / (H ** 0.5)
    k_fc = 1.0 / (H ** 0.5)
    keys = jax.random.split(key, 6)

    def unif(k, shape, bound):
        return jax.random.uniform(k, shape, jnp.float32, -bound, bound)

    w_ih = unif(keys[0], (3 * H, input_size), k_rnn)   # PyTorch layout (3H, I), gates r|z|n
    w_hh = unif(keys[1], (3 * H, H), k_rnn)
    b_ih = unif(keys[2], (3 * H,), k_rnn)
    b_hh = unif(keys[3], (3 * H,), k_rnn)
    w_fc = unif(keys[4], (output_size, H), k_fc)       # PyTorch layout (O, H)
    b_fc = unif(keys[5], (output_size,), k_fc)

    # Fold b_hr/b_hz into the hoisted input projection; keep b_hn separate
    # (it is scaled by r inside the n-gate).
    bias_x = (b_ih + jnp.concatenate(
        [b_hh[:2 * H], jnp.zeros((H,), jnp.float32)]))[None, :]     # (1, 3H)
    bias_hn = b_hh[2 * H:][None, :]                                  # (1, H)

    return (w_ih.T, w_hh.T, bias_x, bias_hn, w_fc.T, b_fc[None, :])


# ---------------------------------------------------------------------------
# Pure-JAX reference (same semantics) for a sanity check.
# ---------------------------------------------------------------------------
def reference_forward(x, lengths, params):
    wih_t, whh_t, bias_x, bias_hn, wfc_t, b_fc = params
    B, T, I = x.shape
    H = whh_t.shape[0]
    hp = jax.lax.Precision.HIGHEST
    xp = jnp.einsum("bti,ig->btg", x, wih_t, precision=hp) + bias_x   # (B,T,3H)

    def step(h, xp_t):
        gh = jnp.einsum("bh,hg->bg", h, whh_t, precision=hp)
        r = jax.nn.sigmoid(xp_t[:, :H] + gh[:, :H])
        z = jax.nn.sigmoid(xp_t[:, H:2 * H] + gh[:, H:2 * H])
        n = jnp.tanh(xp_t[:, 2 * H:] + r * (gh[:, 2 * H:] + bias_hn))
        h_new = (1.0 - z) * n + z * h
        return h_new, h_new

    _, hs = lax.scan(step, jnp.zeros((B, H), jnp.float32),
                     jnp.swapaxes(xp, 0, 1))
    hs = jnp.swapaxes(hs, 0, 1)                                       # (B,T,H)
    mask = jnp.arange(T)[None, :, None] < lengths[:, None, None]
    hs = jnp.where(mask, hs, 0.0)
    return jnp.einsum("bth,ho->bto", hs, wfc_t, precision=hp) + b_fc[None]


if __name__ == "__main__":
    key = jax.random.PRNGKey(0)
    pkey, xkey = jax.random.split(key)

    INPUT_SIZE, HIDDEN_SIZE, OUTPUT_SIZE = 8, 32, 4
    B, T = 3, 10

    params = init_params(pkey, INPUT_SIZE, HIDDEN_SIZE, OUTPUT_SIZE)
    x = jax.random.normal(xkey, (B, T, INPUT_SIZE), jnp.float32)
    lengths = jnp.array([7, 10, 4], dtype=jnp.int32)   # unsorted; max(lengths) == T

    y_ref = jax.block_until_ready(reference_forward(x, lengths, params))

    # f32 MXU operands: tight check against the fp32 reference.
    y32 = jax.block_until_ready(
        dynamic_output_layer_forward(x, lengths, params,
                                     matmul_dtype=jnp.float32))
    assert y32.shape == (B, T, OUTPUT_SIZE), y32.shape
    assert bool(jnp.all(jnp.isfinite(y32)))
    assert jnp.allclose(y32, y_ref, rtol=2e-2, atol=1e-3), \
        float(jnp.max(jnp.abs(y32 - y_ref)))

    # bf16 MXU operands (default; v6e/v7x fast path): looser check.
    y16 = jax.block_until_ready(
        dynamic_output_layer_forward(x, lengths, params,
                                     matmul_dtype=jnp.bfloat16))
    assert y16.shape == (B, T, OUTPUT_SIZE), y16.shape
    assert bool(jnp.all(jnp.isfinite(y16)))
    assert jnp.allclose(y16, y_ref, rtol=6e-2, atol=6e-2), \
        float(jnp.max(jnp.abs(y16 - y_ref)))

    print("KERNEL_OK")
</pallas_src>

<mosaic_0001>
module attributes {stable_mosaic.version = 11 : i64} {
  func.func @_gru_fc_kernel(%arg0: i32, %arg1: memref<1xi32, #tpu.memory_space<smem>>, %arg2: memref<10x8x8xf32, #tpu.memory_space<vmem>>, %arg3: memref<8x1xi32, #tpu.memory_space<vmem>>, %arg4: memref<8x96xf32, #tpu.memory_space<vmem>>, %arg5: memref<32x96xf32, #tpu.memory_space<vmem>>, %arg6: memref<1x96xf32, #tpu.memory_space<vmem>>, %arg7: memref<1x32xf32, #tpu.memory_space<vmem>>, %arg8: memref<32x128xf32, #tpu.memory_space<vmem>>, %arg9: memref<1x128xf32, #tpu.memory_space<vmem>>, %arg10: memref<10x8x128xf32, #tpu.memory_space<vmem>>, %arg11: memref<80x96xf32, #tpu.memory_space<vmem>>, %arg12: memref<80x32xf32, #tpu.memory_space<vmem>>) attributes {dimension_semantics = [#tpu.dimension_semantics<parallel>], iteration_bounds = array<i64: 1>, scalar_prefetch = 1 : i64, scratch_operands = 2 : i64, tpu.core_type = #tpu.core_type<tc>, window_params = [{transform_indices = @transform_0, window_bounds = array<i64: 10, 8, 8>}, {transform_indices = @transform_1, window_bounds = array<i64: 8, 1>}, {pipeline_mode = #tpu.pipeline_mode<synchronous>, transform_indices = @transform_2, window_bounds = array<i64: 8, 96>}, {pipeline_mode = #tpu.pipeline_mode<synchronous>, transform_indices = @transform_3, window_bounds = array<i64: 32, 96>}, {pipeline_mode = #tpu.pipeline_mode<synchronous>, transform_indices = @transform_4, window_bounds = array<i64: 1, 96>}, {pipeline_mode = #tpu.pipeline_mode<synchronous>, transform_indices = @transform_5, window_bounds = array<i64: 1, 32>}, {pipeline_mode = #tpu.pipeline_mode<synchronous>, transform_indices = @transform_6, window_bounds = array<i64: 32, 128>}, {pipeline_mode = #tpu.pipeline_mode<synchronous>, transform_indices = @transform_7, window_bounds = array<i64: 1, 128>}, {transform_indices = @transform_8, window_bounds = array<i64: 10, 8, 128>}]} {
    %c0 = arith.constant 0 : index
    %c0_0 = arith.constant 0 : index
    %c0_1 = arith.constant 0 : index
    %0 = vector.load %arg2[%c0, %c0_0, %c0_1] : memref<10x8x8xf32, #tpu.memory_space<vmem>>, vector<10x8x8xf32>
    %1 = vector.shape_cast %0 : vector<10x8x8xf32> to vector<80x8xf32>
    %c0_2 = arith.constant 0 : index
    %c0_3 = arith.constant 0 : index
    %2 = vector.load %arg4[%c0_2, %c0_3] : memref<8x96xf32, #tpu.memory_space<vmem>>, vector<8x96xf32>
    %cst = arith.constant dense<0.000000e+00> : vector<80x96xf32>
    %3 = tpu.matmul %1, %2, %cst {dimension_numbers = #tpu.dot_dimension_numbers<[1], [0], [0], [1], [0, 0, 1, 1], [], []>} : vector<80x8xf32>, vector<8x96xf32>, vector<80x96xf32> -> vector<80x96xf32>
    %c0_4 = arith.constant 0 : index
    %c0_5 = arith.constant 0 : index
    %4 = vector.load %arg6[%c0_4, %c0_5] : memref<1x96xf32, #tpu.memory_space<vmem>>, vector<1x96xf32>
    %5 = vector.broadcast %4 : vector<1x96xf32> to vector<80x96xf32>
    %6 = arith.addf %3, %5 : vector<80x96xf32>
    %c0_6 = arith.constant 0 : index
    %c0_7 = arith.constant 0 : index
    %7 = vector.load %arg11[%c0_6, %c0_7] : memref<80x96xf32, #tpu.memory_space<vmem>>, vector<80x96xf32>
    tpu.vector_store %arg11[%c0_6, %c0_7], %6 {strides = array<i32>} : memref<80x96xf32, #tpu.memory_space<vmem>>, vector<80x96xf32>,
    %c0_8 = arith.constant 0 : index
    %c0_9 = arith.constant 0 : index
    %8 = vector.load %arg5[%c0_8, %c0_9] : memref<32x96xf32, #tpu.memory_space<vmem>>, vector<32x96xf32>
    %c0_10 = arith.constant 0 : index
    %c0_11 = arith.constant 0 : index
    %9 = vector.load %arg7[%c0_10, %c0_11] : memref<1x32xf32, #tpu.memory_space<vmem>>, vector<1x32xf32>
    %10 = vector.shape_cast %9 : vector<1x32xf32> to vector<1x32xf32>
    %11 = vector.broadcast %10 : vector<1x32xf32> to vector<8x32xf32>
    %12 = arith.index_cast %arg0 : i32 to index
    %13 = memref.load %arg1[%12] : memref<1xi32, #tpu.memory_space<smem>>
    %cst_12 = arith.constant 0.000000e+00 : f32
    %14 = vector.broadcast %cst_12 : f32 to vector<8x32xf32>
    %c0_i32 = arith.constant 0 : i32
    %15 = arith.subi %13, %c0_i32 : i32
    %16 = arith.addi %c0_i32, %15 : i32
    %c1_i32 = arith.constant 1 : i32
    %17 = scf.for %arg13 = %c0_i32 to %16 step %c1_i32 iter_args(%arg14 = %14) -> (vector<8x32xf32>)  : i32 {
      %c8_i32 = arith.constant 8 : i32
      %37 = arith.muli %arg13, %c8_i32 : i32
      %38 = tpu.assume_multiple %37, 8 : i32
      %39 = arith.index_cast %38 : i32 to index
      %c0_26 = arith.constant 0 : index
      %40 = vector.load %arg11[%39, %c0_26] : memref<80x96xf32, #tpu.memory_space<vmem>>, vector<8x96xf32>
      %cst_27 = arith.constant dense<0.000000e+00> : vector<8x96xf32>
      %41 = tpu.matmul %arg14, %8, %cst_27 {dimension_numbers = #tpu.dot_dimension_numbers<[1], [0], [0], [1], [0, 0, 1, 1], [], []>} : vector<8x32xf32>, vector<32x96xf32>, vector<8x96xf32> -> vector<8x96xf32>
      %42 = vector.extract_strided_slice %40 {offsets = [0, 0], sizes = [8, 64], strides = [1, 1]} : vector<8x96xf32> to vector<8x64xf32>
      %43 = vector.extract_strided_slice %41 {offsets = [0, 0], sizes = [8, 64], strides = [1, 1]} : vector<8x96xf32> to vector<8x64xf32>
      %44 = arith.addf %42, %43 : vector<8x64xf32>
      %45 = arith.negf %44 : vector<8x64xf32>
      %46 = math.exp %45 : vector<8x64xf32>
      %cst_28 = arith.constant 1.000000e+00 : f32
      %47 = vector.broadcast %cst_28 : f32 to vector<8x64xf32>
      %48 = arith.addf %47, %46 : vector<8x64xf32>
      %49 = arith.divf %47, %48 : vector<8x64xf32>
      %50 = vector.extract_strided_slice %49 {offsets = [0, 0], sizes = [8, 32], strides = [1, 1]} : vector<8x64xf32> to vector<8x32xf32>
      %51 = vector.extract_strided_slice %49 {offsets = [0, 32], sizes = [8, 32], strides = [1, 1]} : vector<8x64xf32> to vector<8x32xf32>
      %52 = vector.extract_strided_slice %40 {offsets = [0, 64], sizes = [8, 32], strides = [1, 1]} : vector<8x96xf32> to vector<8x32xf32>
      %53 = vector.extract_strided_slice %41 {offsets = [0, 64], sizes = [8, 32], strides = [1, 1]} : vector<8x96xf32> to vector<8x32xf32>
      %54 = arith.addf %53, %11 : vector<8x32xf32>
      %55 = arith.mulf %50, %54 : vector<8x32xf32>
      %56 = arith.addf %52, %55 : vector<8x32xf32>
      %57 = math.tanh %56 : vector<8x32xf32>
      %cst_29 = arith.constant 1.000000e+00 : f32
      %58 = vector.broadcast %cst_29 : f32 to vector<8x32xf32>
      %59 = arith.subf %58, %51 : vector<8x32xf32>
      %60 = arith.mulf %59, %57 : vector<8x32xf32>
      %61 = arith.mulf %51, %arg14 : vector<8x32xf32>
      %62 = arith.addf %60, %61 : vector<8x32xf32>
      %63 = arith.index_cast %38 : i32 to index
      %c0_30 = arith.constant 0 : index
      %64 = vector.load %arg12[%63, %c0_30] : memref<80x32xf32, #tpu.memory_space<vmem>>, vector<8x32xf32>
      tpu.vector_store %arg12[%63, %c0_30], %62 {strides = array<i32>} : memref<80x32xf32, #tpu.memory_space<vmem>>, vector<8x32xf32>,
      scf.yield %62 : vector<8x32xf32>
    }
    %c0_13 = arith.constant 0 : index
    %c0_14 = arith.constant 0 : index
    %18 = vector.load %arg12[%c0_13, %c0_14] : memref<80x32xf32, #tpu.memory_space<vmem>>, vector<80x32xf32>
    %19 = vector.shape_cast %18 : vector<80x32xf32> to vector<10x8x32xf32>
    %20 = tpu.iota {dimensions = array<i32: 0>} : vector<10x8x1xi32>
    %c0_15 = arith.constant 0 : index
    %c0_16 = arith.constant 0 : index
    %21 = vector.load %arg3[%c0_15, %c0_16] : memref<8x1xi32, #tpu.memory_space<vmem>>, vector<8x1xi32>
    %22 = vector.shape_cast %21 : vector<8x1xi32> to vector<1x8x1xi32>
    %23 = vector.broadcast %22 : vector<1x8x1xi32> to vector<10x8x1xi32>
    %24 = arith.cmpi slt, %20, %23 : vector<10x8x1xi32>
    %cst_17 = arith.constant 0.000000e+00 : f32
    %25 = vector.shape_cast %24 : vector<10x8x1xi1> to vector<10x8x1xi1>
    %26 = vector.broadcast %25 : vector<10x8x1xi1> to vector<10x8x32xi1>
    %27 = vector.broadcast %cst_17 : f32 to vector<10x8x32xf32>
    %28 = arith.select %26, %19, %27 : vector<10x8x32xi1>, vector<10x8x32xf32>
    %29 = vector.shape_cast %28 : vector<10x8x32xf32> to vector<80x32xf32>
    %c0_18 = arith.constant 0 : index
    %c0_19 = arith.constant 0 : index
    %30 = vector.load %arg8[%c0_18, %c0_19] : memref<32x128xf32, #tpu.memory_space<vmem>>, vector<32x128xf32>
    %cst_20 = arith.constant dense<0.000000e+00> : vector<80x128xf32>
    %31 = tpu.matmul %29, %30, %cst_20 {dimension_numbers = #tpu.dot_dimension_numbers<[1], [0], [0], [1], [0, 0, 1, 1], [], []>} : vector<80x32xf32>, vector<32x128xf32>, vector<80x128xf32> -> vector<80x128xf32>
    %c0_21 = arith.constant 0 : index
    %c0_22 = arith.constant 0 : index
    %32 = vector.load %arg9[%c0_21, %c0_22] : memref<1x128xf32, #tpu.memory_space<vmem>>, vector<1x128xf32>
    %33 = vector.broadcast %32 : vector<1x128xf32> to vector<80x128xf32>
    %34 = arith.addf %31, %33 : vector<80x128xf32>
    %35 = vector.shape_cast %34 : vector<80x128xf32> to vector<10x8x128xf32>
    %c0_23 = arith.constant 0 : index
    %c0_24 = arith.constant 0 : index
    %c0_25 = arith.constant 0 : index
    %36 = vector.load %arg10[%c0_23, %c0_24, %c0_25] : memref<10x8x128xf32, #tpu.memory_space<vmem>>, vector<10x8x128xf32>
    tpu.vector_store %arg10[%c0_23, %c0_24, %c0_25], %35 {strides = array<i32>} : memref<10x8x128xf32, #tpu.memory_space<vmem>>, vector<10x8x128xf32>,
    return
  }
  func.func @transform_0(%arg0: i32, %arg1: memref<1xi32, #tpu.memory_space<smem>>) -> (i32, i32, i32) {
    %c0_i32 = arith.constant 0 : i32
    %c0_i32_0 = arith.constant 0 : i32
    %c0_i32_1 = arith.constant 0 : i32
    return %c0_i32, %arg0, %c0_i32_0 : i32, i32, i32
  }
  func.func @transform_1(%arg0: i32, %arg1: memref<1xi32, #tpu.memory_space<smem>>) -> (i32, i32) {
    %c0_i32 = arith.constant 0 : i32
    %c0_i32_0 = arith.constant 0 : i32
    return %arg0, %c0_i32 : i32, i32
  }
  func.func @transform_2(%arg0: i32, %arg1: memref<1xi32, #tpu.memory_space<smem>>) -> (i32, i32) {
    %c0_i32 = arith.constant 0 : i32
    %c0_i32_0 = arith.constant 0 : i32
    %c0_i32_1 = arith.constant 0 : i32
    return %c0_i32, %c0_i32_0 : i32, i32
  }
  func.func @transform_3(%arg0: i32, %arg1: memref<1xi32, #tpu.memory_space<smem>>) -> (i32, i32) {
    %c0_i32 = arith.constant 0 : i32
    %c0_i32_0 = arith.constant 0 : i32
    %c0_i32_1 = arith.constant 0 : i32
    return %c0_i32, %c0_i32_0 : i32, i32
  }
  func.func @transform_4(%arg0: i32, %arg1: memref<1xi32, #tpu.memory_space<smem>>) -> (i32, i32) {
    %c0_i32 = arith.constant 0 : i32
    %c0_i32_0 = arith.constant 0 : i32
    %c0_i32_1 = arith.constant 0 : i32
    return %c0_i32, %c0_i32_0 : i32, i32
  }
  func.func @transform_5(%arg0: i32, %arg1: memref<1xi32, #tpu.memory_space<smem>>) -> (i32, i32) {
    %c0_i32 = arith.constant 0 : i32
    %c0_i32_0 = arith.constant 0 : i32
    %c0_i32_1 = arith.constant 0 : i32
    return %c0_i32, %c0_i32_0 : i32, i32
  }
  func.func @transform_6(%arg0: i32, %arg1: memref<1xi32, #tpu.memory_space<smem>>) -> (i32, i32) {
    %c0_i32 = arith.constant 0 : i32
    %c0_i32_0 = arith.constant 0 : i32
    %c0_i32_1 = arith.constant 0 : i32
    return %c0_i32, %c0_i32_0 : i32, i32
  }
  func.func @transform_7(%arg0: i32, %arg1: memref<1xi32, #tpu.memory_space<smem>>) -> (i32, i32) {
    %c0_i32 = arith.constant 0 : i32
    %c0_i32_0 = arith.constant 0 : i32
    %c0_i32_1 = arith.constant 0 : i32
    return %c0_i32, %c0_i32_0 : i32, i32
  }
  func.func @transform_8(%arg0: i32, %arg1: memref<1xi32, #tpu.memory_space<smem>>) -> (i32, i32, i32) {
    %c0_i32 = arith.constant 0 : i32
    %c0_i32_0 = arith.constant 0 : i32
    %c0_i32_1 = arith.constant 0 : i32
    return %c0_i32, %arg0, %c0_i32_0 : i32, i32, i32
  }
}

</mosaic_0001>

<llo_original>
// kernel: neg.1
$region0: #{neg.1}
  #allocation0 [shape = 's32[1]{0}', space=sflag, size = 0x4, scoped, tag = 'scoped memory for neg.1']
  %s0 = inlined_call_operand.vmem [shape: s32[3], index: 0, kind: input, shape index: {}]
  %s1 = inlined_call_operand.vmem [shape: s32[3], index: 1, kind: output, shape index: {}]
  %v2 = vld [vmem:[%s0] sm:$0x1]
  %3 = xla_tuple %v2
  %4 = xla_tuple %3
  %v5 = vsub.s32 0, %v2
  %6 = xla_tuple %v5
  %7 = vst [vmem:[%s1] sm:$0x1] %v5

</llo_original>
